<compile_context>
chip_gen: v7x
topology: tpu7x:2x2x1
jax: 0.10.0
libtpu: 0.0.40
codegen_flags: <defaults>
</compile_context>

<pallas_src>
import functools

import jax
import jax.numpy as jnp
from jax.experimental import pallas as pl
from jax.experimental.pallas import tpu as pltpu


def _softplus(x):
    # numerically-stable softplus (VPU + EUP exp/log)
    return jnp.maximum(x, 0.0) + jnp.log1p(jnp.exp(-jnp.abs(x)))


def intrinsics_kernel(x_ref, w_ref, o_ref, *, img_width, img_height):
    # x_ref : (B, C, HW)  channel-first bottleneck (free contiguous reshape of NCHW)
    # w_ref : (4, C)      pre-folded weights: rows 0-1 = focal/HW,
    #                     rows 2-3 = offsets * [W_img, H_img] / HW
    # o_ref : (B, 128)    lane-dense slab; lanes 0..15 hold the flattened 4x4 matrix
    x = x_ref[...]                                        # (B, C, HW)
    w = w_ref[...]                                        # (4, C)
    B, C, HW = x.shape

    # MXU-first: contract over channels (K = C) before the spatial reduction so the
    # big reduction rides the otherwise-idle MXU; only a one-vreg lane reduce remains.
    w_b = jnp.broadcast_to(w[None], (B,) + w.shape)       # (B, 4, C)
    r = jnp.einsum('bkc,bch->bkh', w_b, x,
                   preferred_element_type=jnp.float32)    # (B, 4, HW)  MXU
    z = jnp.sum(r, axis=-1)                               # (B, 4)      tiny lane reduce

    # Static image size as compile-time constants (no whwh VMEM operand):
    #   cols 0,1 (focal):  (softplus(z) + 0.5) * wh = softplus(z)*wh + 0.5*wh
    #   cols 2,3 (offset): z + 0.5*wh   (the wh scale is already folded into the weight)
    col4 = jax.lax.broadcasted_iota(jnp.int32, z.shape, 1)             # (B, 4)
    is_focal = col4 < 2
    wh = jnp.where((col4 == 0) | (col4 == 2), img_width, img_height)   # (B, 4)
    vals = jnp.where(is_focal, _softplus(z) * wh, z) + 0.5 * wh        # (B, 4)

    # Build the flattened 4x4 intrinsics fully vectorized into a lane-dense slab.
    # flat indices: (0,0)=0 fx, (1,1)=5 fy, (0,2)=2 cx, (1,2)=6 cy, (2,2)=10, (3,3)=15.
    col = jax.lax.broadcasted_iota(jnp.int32, o_ref.shape, 1)          # (B, 128)

    def m(k):
        return (col == k).astype(jnp.float32)

    o_ref[...] = (m(10) + m(15)
                  + m(0) * vals[:, 0:1]
                  + m(5) * vals[:, 1:2]
                  + m(2) * vals[:, 2:3]
                  + m(6) * vals[:, 3:4])


def prepare_intrinsics_weights(wf, wo, img_width, img_height, feat_h, feat_w):
    """Fold 1/HW into both 1x1-conv weights, fold the [W_img, H_img] scale into the
    offset rows, and concatenate once at parameter-init time (not per call)."""
    hw = float(feat_h * feat_w)
    wh = jnp.array([img_width, img_height], dtype=jnp.float32)[:, None]   # (2, 1)
    wf_s = wf.astype(jnp.float32) * (1.0 / hw)                            # (2, C)
    wo_s = wo.astype(jnp.float32) * (wh / hw)                             # (2, C)
    return jnp.concatenate([wf_s, wo_s], axis=0)                          # (4, C)


def intrinsics_head(bottleneck_nchw, w_prepared, img_width, img_height):
    """bottleneck_nchw: [B, C, H, W] f32; w_prepared: [4, C] from prepare_intrinsics_weights.
    Returns [B, 4, 4] intrinsics matrices."""
    B, C, H, W = bottleneck_nchw.shape
    HW = H * W
    x = bottleneck_nchw.reshape(B, C, HW)                 # free contiguous reshape

    kernel = functools.partial(intrinsics_kernel,
                               img_width=float(img_width),
                               img_height=float(img_height))

    flat = pl.pallas_call(
        kernel,
        out_shape=jax.ShapeDtypeStruct((B, 128), jnp.float32),
        grid_spec=pltpu.PrefetchScalarGridSpec(
            num_scalar_prefetch=0,
            grid=(1,),                                    # whole working set VMEM-resident
            in_specs=[
                pl.BlockSpec((B, C, HW), lambda i: (0, 0, 0)),
                pl.BlockSpec((4, C), lambda i: (0, 0)),
            ],
            out_specs=pl.BlockSpec((B, 128), lambda i: (0, 0)),
        ),
        compiler_params=pltpu.CompilerParams(
            dimension_semantics=("arbitrary",)),
        cost_estimate=pl.CostEstimate(
            flops=2 * B * 4 * C * HW + B * 4 * HW,        # batched matmul + lane reduce
            transcendentals=8 * B,                        # softplus exp/log on (B,4)
            bytes_accessed=(B * C * HW + 4 * C + B * 128) * 4,
        ),
    )(x, w_prepared)
    return flat[:, :16].reshape(B, 4, 4)


def intrinsics_ref(bottleneck_nchw, wf, wo, img_width, img_height):
    # pure-JAX reference mirroring the PyTorch forward
    B = bottleneck_nchw.shape[0]
    pooled = jnp.mean(bottleneck_nchw, axis=(2, 3))                  # (B, C)
    wh = jnp.array([img_width, img_height], dtype=jnp.float32)
    f = (jax.nn.softplus(pooled @ wf.T) + 0.5) * wh                  # (B, 2)
    o = ((pooled @ wo.T) + 0.5) * wh                                 # (B, 2)
    mats = jnp.tile(jnp.eye(4, dtype=jnp.float32)[None], (B, 1, 1))
    mats = mats.at[:, 0, 0].set(f[:, 0]).at[:, 1, 1].set(f[:, 1])
    mats = mats.at[:, 0, 2].set(o[:, 0]).at[:, 1, 2].set(o[:, 1])
    return mats


if __name__ == "__main__":
    # focal/offset convs take 256 input channels (convs_suqeeze is unused in forward),
    # so the bottleneck must have C=256 for the module's forward to be well-typed.
    B, C, H, W = 2, 256, 8, 8
    img_width, img_height = 640.0, 192.0

    key = jax.random.PRNGKey(0)
    k_x, k_f, k_o = jax.random.split(key, 3)
    bottleneck = jax.random.normal(k_x, (B, C, H, W), dtype=jnp.float32)
    # 1x1 conv weights [2, C, 1, 1] stored squeezed as [2, C]
    wf = jax.random.normal(k_f, (2, C), dtype=jnp.float32) * 0.05
    wo = jax.random.normal(k_o, (2, C), dtype=jnp.float32) * 0.05

    # done once at parameter-init time, not per forward call
    w_prepared = prepare_intrinsics_weights(wf, wo, img_width, img_height, H, W)

    out = intrinsics_head(bottleneck, w_prepared, img_width, img_height)
    out = jax.block_until_ready(out)

    ref = intrinsics_ref(bottleneck, wf, wo, img_width, img_height)
    assert out.shape == (B, 4, 4)
    assert jnp.allclose(out, ref, atol=1e-3, rtol=1e-3), (out, ref)
    print("KERNEL_OK")
</pallas_src>

<mosaic_0001>
module attributes {stable_mosaic.version = 11 : i64} {
  func.func @intrinsics_kernel(%arg0: i32, %arg1: memref<2x256x64xf32, #tpu.memory_space<vmem>>, %arg2: memref<4x256xf32, #tpu.memory_space<vmem>>, %arg3: memref<2x128xf32, #tpu.memory_space<vmem>>) attributes {dimension_semantics = [#tpu.dimension_semantics<arbitrary>], iteration_bounds = array<i64: 1>, scalar_prefetch = 0 : i64, scratch_operands = 0 : i64, tpu.core_type = #tpu.core_type<tc>, window_params = [{pipeline_mode = #tpu.pipeline_mode<synchronous>, transform_indices = @transform_0, window_bounds = array<i64: 2, 256, 64>}, {pipeline_mode = #tpu.pipeline_mode<synchronous>, transform_indices = @transform_1, window_bounds = array<i64: 4, 256>}, {pipeline_mode = #tpu.pipeline_mode<synchronous>, transform_indices = @transform_2, window_bounds = array<i64: 2, 128>}]} {
    %c0 = arith.constant 0 : index
    %c0_0 = arith.constant 0 : index
    %c0_1 = arith.constant 0 : index
    %0 = vector.load %arg1[%c0, %c0_0, %c0_1] : memref<2x256x64xf32, #tpu.memory_space<vmem>>, vector<2x256x64xf32>
    %c0_2 = arith.constant 0 : index
    %c0_3 = arith.constant 0 : index
    %1 = vector.load %arg2[%c0_2, %c0_3] : memref<4x256xf32, #tpu.memory_space<vmem>>, vector<4x256xf32>
    %2 = vector.shape_cast %1 : vector<4x256xf32> to vector<1x4x256xf32>
    %3 = vector.shape_cast %2 : vector<1x4x256xf32> to vector<1x4x256xf32>
    %4 = vector.broadcast %3 : vector<1x4x256xf32> to vector<2x4x256xf32>
    "tpu.trace_start"() <{level = 10 : i32, message = "bkc,bch->bkh"}> : () -> ()
    %cst = arith.constant dense<0.000000e+00> : vector<2x4x64xf32>
    %5 = tpu.matmul %4, %0, %cst {dimension_numbers = #tpu.dot_dimension_numbers<[2], [1], [1], [2], [0, 0, 0, 1, 1, 2], [0], [0]>} : vector<2x4x256xf32>, vector<2x256x64xf32>, vector<2x4x64xf32> -> vector<2x4x64xf32>
    "tpu.trace_stop"() : () -> ()
    %cst_4 = arith.constant dense<0.000000e+00> : vector<2x4xf32>
    %6 = vector.multi_reduction <add>, %5, %cst_4 [2] : vector<2x4x64xf32> to vector<2x4xf32>
    %7 = tpu.iota {dimensions = array<i32: 1>} : vector<2x4xi32>
    %c2_i32 = arith.constant 2 : i32
    %8 = vector.broadcast %c2_i32 : i32 to vector<2x4xi32>
    %9 = arith.cmpi slt, %7, %8 : vector<2x4xi32>
    %c0_i32 = arith.constant 0 : i32
    %10 = vector.broadcast %c0_i32 : i32 to vector<2x4xi32>
    %11 = arith.cmpi eq, %7, %10 : vector<2x4xi32>
    %c2_i32_5 = arith.constant 2 : i32
    %12 = vector.broadcast %c2_i32_5 : i32 to vector<2x4xi32>
    %13 = arith.cmpi eq, %7, %12 : vector<2x4xi32>
    %14 = arith.ori %11, %13 : vector<2x4xi1>
    %cst_6 = arith.constant 6.400000e+02 : f32
    %cst_7 = arith.constant 1.920000e+02 : f32
    %15 = vector.broadcast %cst_6 : f32 to vector<2x4xf32>
    %16 = vector.broadcast %cst_7 : f32 to vector<2x4xf32>
    %17 = arith.select %14, %15, %16 : vector<2x4xi1>, vector<2x4xf32>
    %cst_8 = arith.constant 0.000000e+00 : f32
    %18 = vector.broadcast %cst_8 : f32 to vector<2x4xf32>
    %19 = arith.maximumf %6, %18 : vector<2x4xf32>
    %20 = math.absf %6 : vector<2x4xf32>
    %cst_9 = arith.constant 0.000000e+00 : f32
    %21 = vector.broadcast %cst_9 : f32 to vector<2x4xf32>
    %22 = arith.subf %21, %20 : vector<2x4xf32>
    %23 = math.exp %22 : vector<2x4xf32>
    %24 = math.log1p %23 : vector<2x4xf32>
    %25 = arith.addf %19, %24 : vector<2x4xf32>
    %26 = arith.mulf %25, %17 : vector<2x4xf32>
    %27 = arith.select %9, %26, %6 : vector<2x4xi1>, vector<2x4xf32>
    %cst_10 = arith.constant 5.000000e-01 : f32
    %28 = vector.broadcast %cst_10 : f32 to vector<2x4xf32>
    %29 = arith.mulf %28, %17 : vector<2x4xf32>
    %30 = arith.addf %27, %29 : vector<2x4xf32>
    %31 = tpu.iota {dimensions = array<i32: 1>} : vector<2x128xi32>
    %c10_i32 = arith.constant 10 : i32
    %32 = vector.broadcast %c10_i32 : i32 to vector<2x128xi32>
    %33 = arith.cmpi eq, %31, %32 : vector<2x128xi32>
    %34 = arith.extui %33 : vector<2x128xi1> to vector<2x128xi32>
    %35 = arith.sitofp %34 : vector<2x128xi32> to vector<2x128xf32>
    %c15_i32 = arith.constant 15 : i32
    %36 = vector.broadcast %c15_i32 : i32 to vector<2x128xi32>
    %37 = arith.cmpi eq, %31, %36 : vector<2x128xi32>
    %38 = arith.extui %37 : vector<2x128xi1> to vector<2x128xi32>
    %39 = arith.sitofp %38 : vector<2x128xi32> to vector<2x128xf32>
    %40 = arith.addf %35, %39 : vector<2x128xf32>
    %c0_i32_11 = arith.constant 0 : i32
    %41 = vector.broadcast %c0_i32_11 : i32 to vector<2x128xi32>
    %42 = arith.cmpi eq, %31, %41 : vector<2x128xi32>
    %43 = arith.extui %42 : vector<2x128xi1> to vector<2x128xi32>
    %44 = arith.sitofp %43 : vector<2x128xi32> to vector<2x128xf32>
    %45 = vector.extract_strided_slice %30 {offsets = [0, 0], sizes = [2, 1], strides = [1, 1]} : vector<2x4xf32> to vector<2x1xf32>
    %46 = vector.broadcast %45 : vector<2x1xf32> to vector<2x128xf32>
    %47 = arith.mulf %44, %46 : vector<2x128xf32>
    %48 = arith.addf %40, %47 : vector<2x128xf32>
    %c5_i32 = arith.constant 5 : i32
    %49 = vector.broadcast %c5_i32 : i32 to vector<2x128xi32>
    %50 = arith.cmpi eq, %31, %49 : vector<2x128xi32>
    %51 = arith.extui %50 : vector<2x128xi1> to vector<2x128xi32>
    %52 = arith.sitofp %51 : vector<2x128xi32> to vector<2x128xf32>
    %53 = vector.extract_strided_slice %30 {offsets = [0, 1], sizes = [2, 1], strides = [1, 1]} : vector<2x4xf32> to vector<2x1xf32>
    %54 = vector.broadcast %53 : vector<2x1xf32> to vector<2x128xf32>
    %55 = arith.mulf %52, %54 : vector<2x128xf32>
    %56 = arith.addf %48, %55 : vector<2x128xf32>
    %c2_i32_12 = arith.constant 2 : i32
    %57 = vector.broadcast %c2_i32_12 : i32 to vector<2x128xi32>
    %58 = arith.cmpi eq, %31, %57 : vector<2x128xi32>
    %59 = arith.extui %58 : vector<2x128xi1> to vector<2x128xi32>
    %60 = arith.sitofp %59 : vector<2x128xi32> to vector<2x128xf32>
    %61 = vector.extract_strided_slice %30 {offsets = [0, 2], sizes = [2, 1], strides = [1, 1]} : vector<2x4xf32> to vector<2x1xf32>
    %62 = vector.broadcast %61 : vector<2x1xf32> to vector<2x128xf32>
    %63 = arith.mulf %60, %62 : vector<2x128xf32>
    %64 = arith.addf %56, %63 : vector<2x128xf32>
    %c6_i32 = arith.constant 6 : i32
    %65 = vector.broadcast %c6_i32 : i32 to vector<2x128xi32>
    %66 = arith.cmpi eq, %31, %65 : vector<2x128xi32>
    %67 = arith.extui %66 : vector<2x128xi1> to vector<2x128xi32>
    %68 = arith.sitofp %67 : vector<2x128xi32> to vector<2x128xf32>
    %69 = vector.extract_strided_slice %30 {offsets = [0, 3], sizes = [2, 1], strides = [1, 1]} : vector<2x4xf32> to vector<2x1xf32>
    %70 = vector.broadcast %69 : vector<2x1xf32> to vector<2x128xf32>
    %71 = arith.mulf %68, %70 : vector<2x128xf32>
    %72 = arith.addf %64, %71 : vector<2x128xf32>
    %c0_13 = arith.constant 0 : index
    %c0_14 = arith.constant 0 : index
    %73 = vector.load %arg3[%c0_13, %c0_14] : memref<2x128xf32, #tpu.memory_space<vmem>>, vector<2x128xf32>
    tpu.vector_store %arg3[%c0_13, %c0_14], %72 {strides = array<i32>} : memref<2x128xf32, #tpu.memory_space<vmem>>, vector<2x128xf32>,
    return
  }
  func.func @transform_0(%arg0: i32) -> (i32, i32, i32) {
    %c0_i32 = arith.constant 0 : i32
    %c0_i32_0 = arith.constant 0 : i32
    %c0_i32_1 = arith.constant 0 : i32
    %c0_i32_2 = arith.constant 0 : i32
    return %c0_i32, %c0_i32_0, %c0_i32_1 : i32, i32, i32
  }
  func.func @transform_1(%arg0: i32) -> (i32, i32) {
    %c0_i32 = arith.constant 0 : i32
    %c0_i32_0 = arith.constant 0 : i32
    %c0_i32_1 = arith.constant 0 : i32
    return %c0_i32, %c0_i32_0 : i32, i32
  }
  func.func @transform_2(%arg0: i32) -> (i32, i32) {
    %c0_i32 = arith.constant 0 : i32
    %c0_i32_0 = arith.constant 0 : i32
    %c0_i32_1 = arith.constant 0 : i32
    return %c0_i32, %c0_i32_0 : i32, i32
  }
}

</mosaic_0001>

<llo_original>
// kernel: tpu_custom_call.1
$region0: #{tpu_custom_call.1}
  #allocation0 [shape = 'u32[]', space=smem, size = 0x4, offset = 0x4, fixed_abs, tag = 'smem constant byte address 0x4 - core index']
  #allocation1 [shape = 'u32[144,128]{1,0:T(1,128)}', space=vmem, size = 0x12000, scoped, tag = 'internal scratch']
  %s0 = inlined_call_operand.vmem [shape: f32[2,256,64], index: 0, kind: input, shape index: {}]
  %s1 = inlined_call_operand.vmem [shape: f32[4,256], index: 1, kind: input, shape index: {}]
  %s2 = inlined_call_operand.hbm [shape: f32[2,128], index: 2, kind: output, shape index: {}]
  %s3 = sld [smem:[#allocation0]]
  $region18: #{tpu_custom_call.1} parent=0
    _
  %s5 = ssub.s32 1, %s3
  %s6 = scalar_select 0, %s5, %s3
  $region1: #{tpu_custom_call.1} parent=0
    #allocation2 [shape = 'u8[1024]{0}', space=vmem, size = 0x400, scoped, tag = 'output window, operand 0, single buffered']
    #allocation3 [shape = 's32[1]{0}', space=sflag, size = 0x4, scoped, tag = 'scoped memory for tpu_custom_call.1']
    %7 = vsyncpa [#allocation3], 0
    // Predicated region
    $region2: #{tpu_custom_call.1} parent=1 // pred_check
      _
    $region3: #{tpu_custom_call.1} parent=1 // pred_check_branch
      %9 = sbr.rel (0) target = $region5
    $region4: #{tpu_custom_call.1} parent=1 // pred_region
      _
    $region5: #{tpu_custom_call.1} parent=1 // pred_fallthru
      _
    // Predicated region
    $region6: #{tpu_custom_call.1} parent=1 // pred_check
      _
    $region7: #{tpu_custom_call.1} parent=1 // pred_check_branch
      %11 = sbr.rel (0) target = $region9
    $region8: #{tpu_custom_call.1} parent=1 // pred_region
      _
    $region9: #{tpu_custom_call.1} parent=1 // pred_fallthru
      _
    %v12 = vld [vmem:[%s0] sm:$0xff]
    %v13 = vld [vmem:[%s0 + $0x8] sm:$0xff]
    %v14 = vld [vmem:[%s0 + $0x10] sm:$0xff]
    %v15 = vld [vmem:[%s0 + $0x18] sm:$0xff]
    %v16 = vld [vmem:[%s0 + $0x20] sm:$0xff]
    %v17 = vld [vmem:[%s0 + $0x28] sm:$0xff]
    %v18 = vld [vmem:[%s0 + $0x30] sm:$0xff]
    %v19 = vld [vmem:[%s0 + $0x38] sm:$0xff]
    %v20 = vld [vmem:[%s0 + $0x40] sm:$0xff]
    %v21 = vld [vmem:[%s0 + $0x48] sm:$0xff]
    %v22 = vld [vmem:[%s0 + $0x50] sm:$0xff]
    %v23 = vld [vmem:[%s0 + $0x58] sm:$0xff]
    %v24 = vld [vmem:[%s0 + $0x60] sm:$0xff]
    %v25 = vld [vmem:[%s0 + $0x68] sm:$0xff]
    %v26 = vld [vmem:[%s0 + $0x70] sm:$0xff]
    %v27 = vld [vmem:[%s0 + $0x78] sm:$0xff]
    %v28 = vld [vmem:[%s0 + $0x80] sm:$0xff]
    %v29 = vld [vmem:[%s0 + $0x88] sm:$0xff]
    %v30 = vld [vmem:[%s0 + $0x90] sm:$0xff]
    %v31 = vld [vmem:[%s0 + $0x98] sm:$0xff]
    %v32 = vld [vmem:[%s0 + $0xa0] sm:$0xff]
    %v33 = vld [vmem:[%s0 + $0xa8] sm:$0xff]
    %v34 = vld [vmem:[%s0 + $0xb0] sm:$0xff]
    %v35 = vld [vmem:[%s0 + $0xb8] sm:$0xff]
    %v36 = vld [vmem:[%s0 + $0xc0] sm:$0xff]
    %v37 = vld [vmem:[%s0 + $0xc8] sm:$0xff]
    %v38 = vld [vmem:[%s0 + $0xd0] sm:$0xff]
    %v39 = vld [vmem:[%s0 + $0xd8] sm:$0xff]
    %v40 = vld [vmem:[%s0 + $0xe0] sm:$0xff]
    %v41 = vld [vmem:[%s0 + $0xe8] sm:$0xff]
    %v42 = vld [vmem:[%s0 + $0xf0] sm:$0xff]
    %v43 = vld [vmem:[%s0 + $0xf8] sm:$0xff]
    %v44 = vld [vmem:[%s0 + $0x100] sm:$0xff]
    %v45 = vld [vmem:[%s0 + $0x108] sm:$0xff]
    %v46 = vld [vmem:[%s0 + $0x110] sm:$0xff]
    %v47 = vld [vmem:[%s0 + $0x118] sm:$0xff]
    %v48 = vld [vmem:[%s0 + $0x120] sm:$0xff]
    %v49 = vld [vmem:[%s0 + $0x128] sm:$0xff]
    %v50 = vld [vmem:[%s0 + $0x130] sm:$0xff]
    %v51 = vld [vmem:[%s0 + $0x138] sm:$0xff]
    %v52 = vld [vmem:[%s0 + $0x140] sm:$0xff]
    %v53 = vld [vmem:[%s0 + $0x148] sm:$0xff]
    %v54 = vld [vmem:[%s0 + $0x150] sm:$0xff]
    %v55 = vld [vmem:[%s0 + $0x158] sm:$0xff]
    %v56 = vld [vmem:[%s0 + $0x160] sm:$0xff]
    %v57 = vld [vmem:[%s0 + $0x168] sm:$0xff]
    %v58 = vld [vmem:[%s0 + $0x170] sm:$0xff]
    %v59 = vld [vmem:[%s0 + $0x178] sm:$0xff]
    %v60 = vld [vmem:[%s0 + $0x180] sm:$0xff]
    %v61 = vld [vmem:[%s0 + $0x188] sm:$0xff]
    %v62 = vld [vmem:[%s0 + $0x190] sm:$0xff]
    %v63 = vld [vmem:[%s0 + $0x198] sm:$0xff]
    %v64 = vld [vmem:[%s0 + $0x1a0] sm:$0xff]
    %v65 = vld [vmem:[%s0 + $0x1a8] sm:$0xff]
    %v66 = vld [vmem:[%s0 + $0x1b0] sm:$0xff]
    %v67 = vld [vmem:[%s0 + $0x1b8] sm:$0xff]
    %v68 = vld [vmem:[%s0 + $0x1c0] sm:$0xff]
    %v69 = vld [vmem:[%s0 + $0x1c8] sm:$0xff]
    %v70 = vld [vmem:[%s0 + $0x1d0] sm:$0xff]
    %v71 = vld [vmem:[%s0 + $0x1d8] sm:$0xff]
    %v72 = vld [vmem:[%s0 + $0x1e0] sm:$0xff]
    %v73 = vld [vmem:[%s0 + $0x1e8] sm:$0xff]
    %v74 = vld [vmem:[%s0 + $0x1f0] sm:$0xff]
    %v75 = vld [vmem:[%s0 + $0x1f8] sm:$0xff]
    %v76 = vld [vmem:[%s1] sm:$0xff]
    %v78 = vcombine.high %v76, %v76
    %80 = vmatprep.subr.mxu0 0.0
    %81 = vmatpush1.msra.mxu0 %v12
    %82 = vmatprep.subr.mxu0 0.0
    %83 = vmatpush1.msra.mxu0 %v13
    %84 = vmatprep.subr.mxu0 0.0
    %85 = vmatpush1.msra.mxu0 %v14
    %86 = vmatprep.subr.mxu0 0.0
    %87 = vmatpush1.msra.mxu0 %v15
    %88 = vmatprep.subr.mxu0 0.0
    %89 = vmatpush1.msra.mxu0 %v16
    %90 = vmatprep.subr.mxu0 0.0
    %91 = vmatpush1.msra.mxu0 %v17
    %92 = vmatprep.subr.mxu0 0.0
    %93 = vmatpush1.msra.mxu0 %v18
    %94 = vmatprep.subr.mxu0 0.0
    %95 = vmatpush1.msra.mxu0 %v19
    %96 = vmatprep.subr.mxu0 0.0
    %97 = vmatpush1.msra.mxu0 %v20
    %98 = vmatprep.subr.mxu0 0.0
    %99 = vmatpush1.msra.mxu0 %v21
    %100 = vmatprep.subr.mxu0 0.0
    %101 = vmatpush1.msra.mxu0 %v22
    %102 = vmatprep.subr.mxu0 0.0
    %103 = vmatpush1.msra.mxu0 %v23
    %104 = vmatprep.subr.mxu0 0.0
    %105 = vmatpush1.msra.mxu0 %v24
    %106 = vmatprep.subr.mxu0 0.0
    %107 = vmatpush1.msra.mxu0 %v25
    %108 = vmatprep.subr.mxu0 0.0
    %109 = vmatpush1.msra.mxu0 %v26
    %110 = vmatprep.subr.mxu0 0.0
    %111 = vmatpush1.msra.mxu0 %v27
    %112 = vmatprep.subr.mxu0 0.0
    %113 = vmatpush1.msra.mxu0 %v28
    %114 = vmatprep.subr.mxu0 0.0
    %115 = vmatpush1.msra.mxu0 %v29
    %116 = vmatprep.subr.mxu0 0.0
    %117 = vmatpush1.msra.mxu0 %v30
    %118 = vmatprep.subr.mxu0 0.0
    %119 = vmatpush1.msra.mxu0 %v31
    %120 = vmatprep.subr.mxu0 0.0
    %121 = vmatpush1.msra.mxu0 %v32
    %122 = vmatprep.subr.mxu0 0.0
    %123 = vmatpush1.msra.mxu0 %v33
    %124 = vmatprep.subr.mxu0 0.0
    %125 = vmatpush1.msra.mxu0 %v34
    %126 = vmatprep.subr.mxu0 0.0
    %127 = vmatpush1.msra.mxu0 %v35
    %128 = vmatprep.subr.mxu0 0.0
    %129 = vmatpush1.msra.mxu0 %v36
    %130 = vmatprep.subr.mxu0 0.0
    %131 = vmatpush1.msra.mxu0 %v37
    %132 = vmatprep.subr.mxu0 0.0
    %133 = vmatpush1.msra.mxu0 %v38
    %134 = vmatprep.subr.mxu0 0.0
    %135 = vmatpush1.msra.mxu0 %v39
    %136 = vmatprep.subr.mxu0 0.0
    %137 = vmatpush1.msra.mxu0 %v40
    %138 = vmatprep.subr.mxu0 0.0
    %139 = vmatpush1.msra.mxu0 %v41
    %140 = vmatprep.subr.mxu0 0.0
    %141 = vmatpush1.msra.mxu0 %v42
    %142 = vmatprep.subr.mxu0 0.0
    %143 = vmatpush1.msra.mxu0 %v43
    %144 = vmatprep.mubr.f32.mxu0 %v78
    %145 = vmatmul.mubr.f32.gmra.mrb[0].mxu0 %v76
    %v146 = vpop.f32.mrb[0].mxu0
    %v147 = vadd.f32 0.0, %v146
    %v148 = vpop.f32.mrb[0].mxu0
    %149 = vdwg.mxu0
    %150 = vmatprep.subr.mxu0 0.0
    %151 = vmatpush1.msra.mxu0 %v44
    %152 = vmatprep.subr.mxu0 0.0
    %153 = vmatpush1.msra.mxu0 %v45
    %154 = vmatprep.subr.mxu0 0.0
    %155 = vmatpush1.msra.mxu0 %v46
    %156 = vmatprep.subr.mxu0 0.0
    %157 = vmatpush1.msra.mxu0 %v47
    %158 = vmatprep.subr.mxu0 0.0
    %159 = vmatpush1.msra.mxu0 %v48
    %160 = vmatprep.subr.mxu0 0.0
    %161 = vmatpush1.msra.mxu0 %v49
    %162 = vmatprep.subr.mxu0 0.0
    %163 = vmatpush1.msra.mxu0 %v50
    %164 = vmatprep.subr.mxu0 0.0
    %165 = vmatpush1.msra.mxu0 %v51
    %166 = vmatprep.subr.mxu0 0.0
    %167 = vmatpush1.msra.mxu0 %v52
    %168 = vmatprep.subr.mxu0 0.0
    %169 = vmatpush1.msra.mxu0 %v53
    %170 = vmatprep.subr.mxu0 0.0
    %171 = vmatpush1.msra.mxu0 %v54
    %172 = vmatprep.subr.mxu0 0.0
    %173 = vmatpush1.msra.mxu0 %v55
    %174 = vmatprep.subr.mxu0 0.0
    %175 = vmatpush1.msra.mxu0 %v56
    %176 = vmatprep.subr.mxu0 0.0
    %177 = vmatpush1.msra.mxu0 %v57
    %178 = vmatprep.subr.mxu0 0.0
    %179 = vmatpush1.msra.mxu0 %v58
    %180 = vmatprep.subr.mxu0 0.0
    %181 = vmatpush1.msra.mxu0 %v59
    %182 = vmatprep.subr.mxu0 0.0
    %183 = vmatpush1.msra.mxu0 %v60
    %184 = vmatprep.subr.mxu0 0.0
    %185 = vmatpush1.msra.mxu0 %v61
    %186 = vmatprep.subr.mxu0 0.0
    %187 = vmatpush1.msra.mxu0 %v62
    %188 = vmatprep.subr.mxu0 0.0
    %189 = vmatpush1.msra.mxu0 %v63
    %190 = vmatprep.subr.mxu0 0.0
    %191 = vmatpush1.msra.mxu0 %v64
    %192 = vmatprep.subr.mxu0 0.0
    %193 = vmatpush1.msra.mxu0 %v65
    %194 = vmatprep.subr.mxu0 0.0
    %195 = vmatpush1.msra.mxu0 %v66
    %196 = vmatprep.subr.mxu0 0.0
    %197 = vmatpush1.msra.mxu0 %v67
    %198 = vmatprep.subr.mxu0 0.0
    %199 = vmatpush1.msra.mxu0 %v68
    %200 = vmatprep.subr.mxu0 0.0
    %201 = vmatpush1.msra.mxu0 %v69
    %202 = vmatprep.subr.mxu0 0.0
    %203 = vmatpush1.msra.mxu0 %v70
    %204 = vmatprep.subr.mxu0 0.0
    %205 = vmatpush1.msra.mxu0 %v71
    %206 = vmatprep.subr.mxu0 0.0
    %207 = vmatpush1.msra.mxu0 %v72
    %208 = vmatprep.subr.mxu0 0.0
    %209 = vmatpush1.msra.mxu0 %v73
    %210 = vmatprep.subr.mxu0 0.0
    %211 = vmatpush1.msra.mxu0 %v74
    %212 = vmatprep.subr.mxu0 0.0
    %213 = vmatpush1.msra.mxu0 %v75
    %214 = vmatprep.mubr.f32.mxu0 %v78
    %215 = vmatmul.mubr.f32.gmra.mrb[0].mxu0 %v76
    %v216 = vpop.f32.mrb[0].mxu0
    %v217 = vadd.f32 0.0, %v216
    %v218 = vpop.f32.mrb[0].mxu0
    %219 = vdwg.mxu0
    %vm220 = vcmask 519168
    %v221 = vsel %vm220, %v147, 0.0
    %222 = vadd.xlane.f32.xlu0 %v221
    %v223 = vpop.xlane.xlu0 %222
    %v224 = vsel %vm220, %v217, 0.0
    %225 = vadd.xlane.f32.xlu0 %v224
    %v226 = vpop.xlane.xlu0 %225
    %v227 = vlaneseq
    %v228 = vand.u32 %v227, 127
    %vm229 = vcmp.lt.s32.totalorder %v228, 2
    %vm230 = vcmp.eq.s32.totalorder %v228, 0
    %vm231 = vcmp.eq.s32.totalorder %v228, 2
    %vm232 = vmor %vm230, %vm231
    %v233 = vsel %vm232, 640.0, 192.0
    %v234 = vmax.f32 %v223, 0.0
    %v235 = vmax.f32 %v226, 0.0
    %v236 = vand.u32 2147483647, %v223
    %v237 = vand.u32 2147483647, %v226
    %v238 = vsub.f32 0.0, %v236
    %v239 = vsub.f32 0.0, %v237
    %v240 = vmul.f32 %v238, 1.442695
    %v241 = vpow.pop %v240
    %v242 = vmul.f32 %v239, 1.442695
    %v243 = vpow.pop %v242
    %v244 = vadd.f32 %v241, 1.0
    %v245 = vlog2.pop %v244
    %v246 = vmul.f32 %v245, 0.6931472
    %v247 = vmul.f32 -0.5, %v241
    %v248 = vadd.f32 %v247, 1.0
    %v249 = vmul.f32 %v248, %v241
    %v250 = vand.u32 2147483647, %v241
    %vm251 = vcmp.lt.f32.partialorder %v250, 0.0004427343
    %v252 = vsel %vm251, %v249, %v246
    %v253 = vadd.f32 %v243, 1.0
    %v254 = vlog2.pop %v253
    %v255 = vmul.f32 %v254, 0.6931472
    %v256 = vmul.f32 -0.5, %v243
    %v257 = vadd.f32 %v256, 1.0
    %v258 = vmul.f32 %v257, %v243
    %v259 = vand.u32 2147483647, %v243
    %vm260 = vcmp.lt.f32.partialorder %v259, 0.0004427343
    %v261 = vsel %vm260, %v258, %v255
    %v262 = vadd.f32 %v234, %v252
    %v263 = vadd.f32 %v235, %v261
    %266 = vbcast.lane.b32.xlu0 %v233, 256
    %v267 = vpop.permute.xlu0 %266
    %v269 = vmul.f32 %v262, %v267
    %v270 = vmul.f32 %v263, %v267
    %273 = vset.pattern.permute.xlu0 0
    %274 = vperm.xlu0 %273, %v269
    %v275 = vpop.permute.xlu0 %274
    %276 = vset.pattern.permute.xlu0 0
    %277 = vperm.xlu0 %276, %v270
    %v278 = vpop.permute.xlu0 %277
    %v279 = vlaneseq
    %v280 = vshrl.u32 %v279, 7
    %v281 = vsub.s32 %v228, %v280
    %v282 = vrot.slane %v275, %v281
    %v283 = vlaneseq
    %v284 = vshrl.u32 %v283, 7
    %v285 = vsub.s32 %v228, %v284
    %v286 = vrot.slane %v278, %v285
    %vm287 = vcmask 1041409
    %v288 = vsel %vm287, %v286, %v282
    %v292 = vlaneseq
    %v293 = vshrl.u32 %v292, 7
    %v294 = vsub.s32 %v228, %v293
    %v295 = vrot.slane %v223, %v294
    %v296 = vlaneseq
    %v297 = vshrl.u32 %v296, 7
    %v298 = vsub.s32 %v228, %v297
    %v299 = vrot.slane %v226, %v298
    %v300 = vsel %vm287, %v299, %v295
    %v302 = vsel %vm229, %v288, %v300
    %v303 = vmul.f32 %v233, 0.5
    %v304 = vadd.f32 %v302, %v303
    %vm305 = vcmp.eq.s32.totalorder %v228, 10
    %v306 = vsel %vm305, 1, 0
    %v307 = vcvt.s32.f32 %v306
    %vm308 = vcmp.eq.s32.totalorder %v228, 15
    %v309 = vsel %vm308, 1, 0
    %v310 = vcvt.s32.f32 %v309
    %v311 = vadd.f32 %v307, %v310
    %v312 = vsel %vm230, 1, 0
    %v313 = vcvt.s32.f32 %v312
    %315 = vset.pattern.permute.xlu0 0
    %316 = vperm.xlu0 %315, %v304
    %v317 = vpop.permute.xlu0 %316
    %v319 = vmul.f32 %v313, %v317
    %v320 = vadd.f32 %v311, %v319
    %vm321 = vcmp.eq.s32.totalorder %v228, 5
    %v322 = vsel %vm321, 1, 0
    %v323 = vcvt.s32.f32 %v322
    %324 = vset.pattern.permute.xlu0 1
    %325 = vperm.xlu0 %324, %v304
    %v326 = vpop.permute.xlu0 %325
    %v328 = vmul.f32 %v323, %v326
    %v329 = vadd.f32 %v320, %v328
    %v330 = vsel %vm231, 1, 0
    %v331 = vcvt.s32.f32 %v330
    %332 = vset.pattern.permute.xlu0 2
    %333 = vperm.xlu0 %332, %v304
    %v334 = vpop.permute.xlu0 %333
    %v336 = vmul.f32 %v331, %v334
    %v337 = vadd.f32 %v329, %v336
    %vm338 = vcmp.eq.s32.totalorder %v228, 6
    %v339 = vsel %vm338, 1, 0
    %v340 = vcvt.s32.f32 %v339
    %341 = vset.pattern.permute.xlu0 3
    %342 = vperm.xlu0 %341, %v304
    %v343 = vpop.permute.xlu0 %342
    %v345 = vmul.f32 %v340, %v343
    %v346 = vadd.f32 %v337, %v345
    %347 = vst [vmem:[#allocation2] sm:$0x3] %v346
    // Predicated region
    $region10: #{tpu_custom_call.1} parent=1 // pred_check
      _
    $region11: #{tpu_custom_call.1} parent=1 // pred_check_branch
      %349 = sbr.rel (0) target = $region13
    $region12: #{tpu_custom_call.1} parent=1 // pred_region
      %s351 = ssub.s32 32, 32
      %352 = vsyncadd [#allocation3], %s351
      %s354 = sshll.u32 [#allocation2], 4
      %s355 = int_to_ptr.vmem [resolvable:$true] %s354
      %357 = dma.vmem_to_hbm [thread:$0]  %s355, 32, %s2, [#allocation3]
    $region13: #{tpu_custom_call.1} parent=1 // pred_fallthru
      _
    // Predicated region
    $region14: #{tpu_custom_call.1} parent=1 // pred_check
      _
    $region15: #{tpu_custom_call.1} parent=1 // pred_check_branch
      %359 = sbr.rel (0) target = $region17
    $region16: #{tpu_custom_call.1} parent=1 // pred_region
      %360 = dma.done [#allocation3], 32
    $region17: #{tpu_custom_call.1} parent=1 // pred_fallthru
      _
    %361 = vsyncpa [#allocation3], 1

</llo_original>
